<compile_context>
chip_gen: v6e
topology: v6e:2x2x1
jax: 0.10.0
libtpu: 0.0.40
codegen_flags: <defaults>
</compile_context>

<pallas_src>
import functools

import jax
import jax.numpy as jnp
import numpy as np
from jax.experimental import pallas as pl
from jax.experimental.pallas import tpu as pltpu

EPS = 1e-6  # matches the PyTorch module


def _pick_rows_per_block(num_rows, row_bytes, target_bytes):
    """Rows per block: multiple of 8 (or the full dim), block <= ~target_bytes."""
    cap = max(1, int(target_bytes) // max(1, row_bytes))
    if cap >= num_rows:
        return num_rows                      # one block covers the full dim (always legal)
    # Prefer an exact divisor that is a multiple of 8: perfectly tiled grid.
    for d in range(min(cap, num_rows), 7, -1):
        if num_rows % d == 0 and d % 8 == 0:
            return d
    # Otherwise use a multiple-of-8 block; Pallas masks the ragged last block
    # (rows are independent, so padded rows never contaminate valid output).
    return min(num_rows, max(8, (cap // 8) * 8))


def _grad_mag_kernel(col_ref, x_ref, o_ref, *, H, W):
    """Block = (B, H*W): B independent image planes, flattened lane-dense."""
    HW = H * W
    x = x_ref[...].astype(jnp.float32)          # (B, HW)
    B = x.shape[0]

    col = col_ref[...]                          # (1, HW) int32, precomputed in wrapper
    is_first_col = col == 0
    is_last_col = col == W - 1

    zrow = jnp.zeros((B, W), jnp.float32)
    zone = jnp.zeros((B, 1), jnp.float32)

    # Vertical neighbors: flat shifts by +/- W with zero rows injected at the plane
    # edges -> no masking needed, nothing leaks across planes.
    down = jnp.concatenate([x[:, W:], zrow], axis=1)          # x[h+1, w] (0 at h == H-1)
    up = jnp.concatenate([zrow, x[:, :HW - W]], axis=1)       # x[h-1, w] (0 at h == 0)

    # Horizontal neighbors: flat shifts by +/- 1, masked at the image-row boundaries.
    right = jnp.where(is_last_col, 0.0,
                      jnp.concatenate([x[:, 1:], zone], axis=1))      # x[h, w+1]
    left = jnp.where(is_first_col, 0.0,
                     jnp.concatenate([zone, x[:, :HW - 1]], axis=1))  # x[h, w-1]

    gv = down - up        # conv2d with kernel_v, padding=1
    gh = right - left     # conv2d with kernel_h, padding=1
    o_ref[...] = jnp.sqrt(gv * gv + gh * gh + EPS).astype(o_ref.dtype)


def get_gradient_nopadding(x, *, target_block_bytes=4 << 20):
    """x: (N, C, H, W) -> (N, C, H, W) per-channel gradient magnitude."""
    N, C, H, W = x.shape
    NC, HW = N * C, H * W
    x2 = x.reshape(NC, HW)                       # free row-major reshape; lane-dense last dim

    elem_bytes = jnp.dtype(jnp.float32).itemsize
    B = _pick_rows_per_block(NC, HW * elem_bytes, target_block_bytes)
    grid = (pl.cdiv(NC, B),)

    # Column index of each flattened pixel (constant; block index never changes, so it
    # is DMA'd into VMEM once and stays resident across the whole grid).
    col_ids = (jnp.arange(HW, dtype=jnp.int32) % W).reshape(1, HW)

    out2 = pl.pallas_call(
        functools.partial(_grad_mag_kernel, H=H, W=W),
        out_shape=jax.ShapeDtypeStruct((NC, HW), x.dtype),
        grid_spec=pltpu.PrefetchScalarGridSpec(
            num_scalar_prefetch=0,
            grid=grid,
            in_specs=[
                pl.BlockSpec((1, HW), lambda i: (0, 0)),   # column ids (resident)
                pl.BlockSpec((B, HW), lambda i: (i, 0)),   # batch of B flattened planes
            ],
            out_specs=pl.BlockSpec((B, HW), lambda i: (i, 0)),
        ),
        compiler_params=pltpu.CompilerParams(
            dimension_semantics=("parallel",),
            vmem_limit_bytes=48 * 1024 * 1024,
        ),
        cost_estimate=pl.CostEstimate(
            flops=8 * NC * HW,
            transcendentals=NC * HW,
            bytes_accessed=2 * NC * HW * elem_bytes + HW * 4,
        ),
    )(col_ids, x2)
    return out2.reshape(N, C, H, W)


def _reference(x):
    """Pure-JAX reference (same math as the PyTorch forward)."""
    xp = jnp.pad(x, ((0, 0), (0, 0), (1, 1), (1, 1)))
    gv = xp[:, :, 2:, 1:-1] - xp[:, :, :-2, 1:-1]   # x[h+1,w] - x[h-1,w]
    gh = xp[:, :, 1:-1, 2:] - xp[:, :, 1:-1, :-2]   # x[h,w+1] - x[h,w-1]
    return jnp.sqrt(gv * gv + gh * gh + EPS)


if __name__ == "__main__":
    key = jax.random.PRNGKey(0)
    x = jax.random.normal(key, (2, 4, 16, 16), dtype=jnp.float32)

    out = jax.block_until_ready(get_gradient_nopadding(x))
    ref = jax.block_until_ready(_reference(x))

    assert out.shape == (2, 4, 16, 16), out.shape
    np.testing.assert_allclose(np.asarray(out), np.asarray(ref), rtol=1e-5, atol=1e-5)
    print("KERNEL_OK")
</pallas_src>

<mosaic_0001>
module attributes {stable_mosaic.version = 11 : i64} {
  func.func @_grad_mag_kernel(%arg0: i32, %arg1: memref<1x256xi32, #tpu.memory_space<vmem>>, %arg2: memref<8x256xf32, #tpu.memory_space<vmem>>, %arg3: memref<8x256xf32, #tpu.memory_space<vmem>>) attributes {dimension_semantics = [#tpu.dimension_semantics<parallel>], iteration_bounds = array<i64: 1>, scalar_prefetch = 0 : i64, scratch_operands = 0 : i64, tpu.core_type = #tpu.core_type<tc>, window_params = [{pipeline_mode = #tpu.pipeline_mode<synchronous>, transform_indices = @transform_0, window_bounds = array<i64: 1, 256>}, {transform_indices = @transform_1, window_bounds = array<i64: 8, 256>}, {transform_indices = @transform_2, window_bounds = array<i64: 8, 256>}]} {
    %c0 = arith.constant 0 : index
    %c0_0 = arith.constant 0 : index
    %0 = vector.load %arg2[%c0, %c0_0] : memref<8x256xf32, #tpu.memory_space<vmem>>, vector<8x256xf32>
    %c0_1 = arith.constant 0 : index
    %c0_2 = arith.constant 0 : index
    %1 = vector.load %arg1[%c0_1, %c0_2] : memref<1x256xi32, #tpu.memory_space<vmem>>, vector<1x256xi32>
    %c0_i32 = arith.constant 0 : i32
    %2 = vector.broadcast %c0_i32 : i32 to vector<1x256xi32>
    %3 = arith.cmpi eq, %1, %2 : vector<1x256xi32>
    %c15_i32 = arith.constant 15 : i32
    %4 = vector.broadcast %c15_i32 : i32 to vector<1x256xi32>
    %5 = arith.cmpi eq, %1, %4 : vector<1x256xi32>
    %cst = arith.constant 0.000000e+00 : f32
    %6 = vector.broadcast %cst : f32 to vector<8x16xf32>
    %cst_3 = arith.constant 0.000000e+00 : f32
    %7 = vector.broadcast %cst_3 : f32 to vector<8x1xf32>
    %8 = vector.extract_strided_slice %0 {offsets = [0, 16], sizes = [8, 240], strides = [1, 1]} : vector<8x256xf32> to vector<8x240xf32>
    %9 = tpu.concatenate %8, %6 in 1 : vector<8x240xf32>, vector<8x16xf32> -> vector<8x256xf32>
    %10 = vector.extract_strided_slice %0 {offsets = [0, 0], sizes = [8, 240], strides = [1, 1]} : vector<8x256xf32> to vector<8x240xf32>
    %11 = tpu.concatenate %6, %10 in 1 : vector<8x16xf32>, vector<8x240xf32> -> vector<8x256xf32>
    %12 = vector.extract_strided_slice %0 {offsets = [0, 1], sizes = [8, 255], strides = [1, 1]} : vector<8x256xf32> to vector<8x255xf32>
    %13 = tpu.concatenate %12, %7 in 1 : vector<8x255xf32>, vector<8x1xf32> -> vector<8x256xf32>
    %cst_4 = arith.constant 0.000000e+00 : f32
    %14 = vector.shape_cast %5 : vector<1x256xi1> to vector<1x256xi1>
    %15 = vector.broadcast %14 : vector<1x256xi1> to vector<8x256xi1>
    %16 = vector.broadcast %cst_4 : f32 to vector<8x256xf32>
    %17 = arith.select %15, %16, %13 : vector<8x256xi1>, vector<8x256xf32>
    %18 = vector.extract_strided_slice %0 {offsets = [0, 0], sizes = [8, 255], strides = [1, 1]} : vector<8x256xf32> to vector<8x255xf32>
    %19 = tpu.concatenate %7, %18 in 1 : vector<8x1xf32>, vector<8x255xf32> -> vector<8x256xf32>
    %cst_5 = arith.constant 0.000000e+00 : f32
    %20 = vector.shape_cast %3 : vector<1x256xi1> to vector<1x256xi1>
    %21 = vector.broadcast %20 : vector<1x256xi1> to vector<8x256xi1>
    %22 = vector.broadcast %cst_5 : f32 to vector<8x256xf32>
    %23 = arith.select %21, %22, %19 : vector<8x256xi1>, vector<8x256xf32>
    %24 = arith.subf %9, %11 : vector<8x256xf32>
    %25 = arith.subf %17, %23 : vector<8x256xf32>
    %26 = arith.mulf %24, %24 : vector<8x256xf32>
    %27 = arith.mulf %25, %25 : vector<8x256xf32>
    %28 = arith.addf %26, %27 : vector<8x256xf32>
    %cst_6 = arith.constant 9.99999997E-7 : f32
    %29 = vector.broadcast %cst_6 : f32 to vector<8x256xf32>
    %30 = arith.addf %28, %29 : vector<8x256xf32>
    %31 = math.sqrt %30 : vector<8x256xf32>
    %c0_7 = arith.constant 0 : index
    %c0_8 = arith.constant 0 : index
    %32 = vector.load %arg3[%c0_7, %c0_8] : memref<8x256xf32, #tpu.memory_space<vmem>>, vector<8x256xf32>
    tpu.vector_store %arg3[%c0_7, %c0_8], %31 {strides = array<i32>} : memref<8x256xf32, #tpu.memory_space<vmem>>, vector<8x256xf32>,
    return
  }
  func.func @transform_0(%arg0: i32) -> (i32, i32) {
    %c0_i32 = arith.constant 0 : i32
    %c0_i32_0 = arith.constant 0 : i32
    %c0_i32_1 = arith.constant 0 : i32
    return %c0_i32, %c0_i32_0 : i32, i32
  }
  func.func @transform_1(%arg0: i32) -> (i32, i32) {
    %c0_i32 = arith.constant 0 : i32
    %c0_i32_0 = arith.constant 0 : i32
    return %arg0, %c0_i32 : i32, i32
  }
  func.func @transform_2(%arg0: i32) -> (i32, i32) {
    %c0_i32 = arith.constant 0 : i32
    %c0_i32_0 = arith.constant 0 : i32
    return %arg0, %c0_i32 : i32, i32
  }
}

</mosaic_0001>

<llo_original>
// kernel: tpu_custom_call.1
$region0: #{tpu_custom_call.1}
  #allocation0 [shape = 'u32[]', space=smem, size = 0x4, offset = 0x4, fixed_abs, tag = 'smem constant byte address 0x4 - core index']
  #allocation1 [shape = 'u32[144,128]{1,0:T(1,128)}', space=vmem, size = 0x12000, scoped, tag = 'internal scratch']
  %s0 = inlined_call_operand.hbm [shape: s32[1,256], index: 0, kind: input, shape index: {}]
  %s1 = inlined_call_operand.hbm [shape: f32[8,256], index: 1, kind: input, shape index: {}]
  %s2 = inlined_call_operand.hbm [shape: f32[8,256], index: 2, kind: output, shape index: {}]
  %s3 = sld [smem:[#allocation0]]
  $region26: #{tpu_custom_call.1} parent=0
    _
  %s5 = ssub.s32 1, %s3
  %s6 = scalar_select 0, %s5, %s3
  $region1: #{tpu_custom_call.1} parent=0
    #allocation2 [shape = 'u8[1024]{0}', space=vmem, size = 0x400, scoped, tag = 'input window, operand 0, single buffered']
    #allocation3 [shape = 's32[1]{0}', space=sflag, size = 0x4, scoped, tag = 'scoped memory for tpu_custom_call.1']
    #allocation4 [shape = 's32[1]{0}', space=sflag, size = 0x4, scoped, tag = 'scoped memory for tpu_custom_call.1']
    #allocation5 [shape = 'u8[8192]{0}', space=vmem, size = 0x2000, scoped, tag = 'input window, operand 1, single buffered']
    #allocation6 [shape = 's32[1]{0}', space=sflag, size = 0x4, scoped, tag = 'scoped memory for tpu_custom_call.1']
    #allocation7 [shape = 'u8[8192]{0}', space=vmem, size = 0x2000, scoped, tag = 'output window, operand 0, single buffered']
    %7 = vsyncpa [#allocation3], 0
    %8 = vsyncpa [#allocation6], 0
    %9 = vsyncpa [#allocation4], 0
    // Predicated region
    $region2: #{tpu_custom_call.1} parent=1 // pred_check
      _
    $region3: #{tpu_custom_call.1} parent=1 // pred_check_branch
      %11 = sbr.rel (0) target = $region5
    $region4: #{tpu_custom_call.1} parent=1 // pred_region
      %s13 = ssub.s32 32, 32
      %14 = vsyncadd [#allocation3], %s13
      %s16 = sshll.u32 [#allocation2], 4
      %s17 = int_to_ptr.vmem [resolvable:$true] %s16
      %19 = dma.hbm_to_vmem [thread:$0]  %s0, 32, %s17, [#allocation3]
    $region5: #{tpu_custom_call.1} parent=1 // pred_fallthru
      _
    // Predicated region
    $region6: #{tpu_custom_call.1} parent=1 // pred_check
      _
    $region7: #{tpu_custom_call.1} parent=1 // pred_check_branch
      %21 = sbr.rel (0) target = $region9
    $region8: #{tpu_custom_call.1} parent=1 // pred_region
      %s23 = ssub.s32 256, 256
      %24 = vsyncadd [#allocation6], %s23
      %s26 = sshll.u32 [#allocation5], 4
      %s27 = int_to_ptr.vmem [resolvable:$true] %s26
      %29 = dma.hbm_to_vmem [thread:$0]  %s1, 256, %s27, [#allocation6]
    $region9: #{tpu_custom_call.1} parent=1 // pred_fallthru
      _
    // Predicated region
    $region10: #{tpu_custom_call.1} parent=1 // pred_check
      _
    $region11: #{tpu_custom_call.1} parent=1 // pred_check_branch
      %31 = sbr.rel (0) target = $region13
    $region12: #{tpu_custom_call.1} parent=1 // pred_region
      %32 = dma.done [#allocation3], 32
    $region13: #{tpu_custom_call.1} parent=1 // pred_fallthru
      _
    // Predicated region
    $region14: #{tpu_custom_call.1} parent=1 // pred_check
      _
    $region15: #{tpu_custom_call.1} parent=1 // pred_check_branch
      %34 = sbr.rel (0) target = $region17
    $region16: #{tpu_custom_call.1} parent=1 // pred_region
      %35 = dma.done [#allocation6], 256
    $region17: #{tpu_custom_call.1} parent=1 // pred_fallthru
      _
    %v36 = vld [vmem:[#allocation5] sm:$0xff]
    %v37 = vld [vmem:[#allocation5 + $0x8] sm:$0xff]
    %v38 = vld [vmem:[#allocation2] sm:$0x3]
    %vm39 = vcmp.eq.s32.totalorder %v38, 0
    %vm40 = vcmp.eq.s32.totalorder %v38, 15
    %43 = vrot.lane.b32.xlu0 %v36, 112
    %v44 = vpop.permute.xlu0 %43
    %45 = vrot.lane.b32.xlu0 %v37, 112
    %v46 = vpop.permute.xlu0 %45
    %vm47 = vcmask 916480
    %v48 = vsel %vm47, %v44, %v46
    %v51 = vsel %vm47, %v46, 0.0
    %52 = vrot.lane.b32.xlu0 %v36, 16
    %v53 = vpop.permute.xlu0 %52
    %54 = vrot.lane.b32.xlu0 %v37, 16
    %v55 = vpop.permute.xlu0 %54
    %vm56 = vcmask 130048
    %v57 = vsel %vm56, %v53, %v55
    %v60 = vsel %vm56, 0.0, %v53
    %61 = vrot.lane.b32.xlu0 %v36, 127
    %v62 = vpop.permute.xlu0 %61
    %63 = vrot.lane.b32.xlu0 %v37, 127
    %v64 = vpop.permute.xlu0 %63
    %vm65 = vcmask 1039360
    %v66 = vsel %vm65, %v62, %v64
    %v69 = vsel %vm65, %v64, 0.0
    %v70 = vsel %vm40, 1, 0
    %v71 = vlaneseq
    %v72 = vshrl.u32 %v71, 7
    %v73 = vsub.s32 0, %v72
    %v74 = vrot.slane %v70, %v73
    %v75 = vlaneseq
    %v76 = vshrl.u32 %v75, 7
    %v77 = vsub.s32 1, %v76
    %v78 = vrot.slane %v70, %v77
    %vm79 = vcmp.eq.s32.totalorder %v74, 1
    %vm80 = vcmp.eq.s32.totalorder %v78, 1
    %v81 = vsel %vm79, 0.0, %v66
    %v82 = vsel %vm80, 0.0, %v69
    %83 = vrot.lane.b32.xlu0 %v36, 1
    %v84 = vpop.permute.xlu0 %83
    %85 = vrot.lane.b32.xlu0 %v37, 1
    %v86 = vpop.permute.xlu0 %85
    %vm87 = vcmask 7168
    %v88 = vsel %vm87, %v84, %v86
    %v91 = vsel %vm87, 0.0, %v84
    %v92 = vsel %vm39, 1, 0
    %v93 = vlaneseq
    %v94 = vshrl.u32 %v93, 7
    %v95 = vsub.s32 0, %v94
    %v96 = vrot.slane %v92, %v95
    %v97 = vlaneseq
    %v98 = vshrl.u32 %v97, 7
    %v99 = vsub.s32 1, %v98
    %v100 = vrot.slane %v92, %v99
    %vm101 = vcmp.eq.s32.totalorder %v96, 1
    %vm102 = vcmp.eq.s32.totalorder %v100, 1
    %v103 = vsel %vm101, 0.0, %v91
    %v104 = vsel %vm102, 0.0, %v88
    %v105 = vsub.f32 %v48, %v60
    %v106 = vsub.f32 %v51, %v57
    %v107 = vsub.f32 %v81, %v103
    %v108 = vsub.f32 %v82, %v104
    %v109 = vmul.f32 %v105, %v105
    %v110 = vmul.f32 %v106, %v106
    %v111 = vmul.f32 %v107, %v107
    %v112 = vmul.f32 %v108, %v108
    %v113 = vadd.f32 %v109, %v111
    %v114 = vadd.f32 %v110, %v112
    %v115 = vadd.f32 %v113, 1e-06
    %v116 = vadd.f32 %v114, 1e-06
    %v117 = vrsqrt.pop %v115
    %v118 = vmul.f32 %v115, %v117
    %vm119 = vcmp.eq.f32.partialorder %v115, inf
    %v120 = vsel %vm119, %v115, %v118
    %vm121 = vcmp.eq.f32.partialorder %v115, 0.0
    %v122 = vand.u32 %v115, 2147483648
    %v123 = vsel %vm121, %v122, %v120
    %v124 = vrsqrt.pop %v116
    %v125 = vmul.f32 %v116, %v124
    %vm126 = vcmp.eq.f32.partialorder %v116, inf
    %v127 = vsel %vm126, %v116, %v125
    %vm128 = vcmp.eq.f32.partialorder %v116, 0.0
    %v129 = vand.u32 %v116, 2147483648
    %v130 = vsel %vm128, %v129, %v127
    %131 = vst [vmem:[#allocation7] sm:$0xff] %v123
    %132 = vst [vmem:[#allocation7 + $0x8] sm:$0xff] %v130
    // Predicated region
    $region18: #{tpu_custom_call.1} parent=1 // pred_check
      _
    $region19: #{tpu_custom_call.1} parent=1 // pred_check_branch
      %134 = sbr.rel (0) target = $region21
    $region20: #{tpu_custom_call.1} parent=1 // pred_region
      %s136 = ssub.s32 256, 256
      %137 = vsyncadd [#allocation4], %s136
      %s139 = sshll.u32 [#allocation7], 4
      %s140 = int_to_ptr.vmem [resolvable:$true] %s139
      %142 = dma.vmem_to_hbm [thread:$0]  %s140, 256, %s2, [#allocation4]
    $region21: #{tpu_custom_call.1} parent=1 // pred_fallthru
      _
    // Predicated region
    $region22: #{tpu_custom_call.1} parent=1 // pred_check
      _
    $region23: #{tpu_custom_call.1} parent=1 // pred_check_branch
      %144 = sbr.rel (0) target = $region25
    $region24: #{tpu_custom_call.1} parent=1 // pred_region
      %145 = dma.done [#allocation4], 256
    $region25: #{tpu_custom_call.1} parent=1 // pred_fallthru
      _
    %146 = vsyncpa [#allocation3], 1
    %147 = vsyncpa [#allocation6], 1
    %148 = vsyncpa [#allocation4], 1

</llo_original>
